<compile_context>
chip_gen: v7x
topology: tpu7x:2x2x1
jax: 0.10.0
libtpu: 0.0.40
codegen_flags: <defaults>
</compile_context>

<pallas_src>
import jax
import jax.numpy as jnp
from jax.experimental import pallas as pl
from jax.experimental.pallas import tpu as pltpu


_LANE = 128
# Lanes per grid step.  Fused (8, bn) f32 input block = 32*bn bytes, double
# buffered = 64*bn; the (3, bn) f32 accumulator occupies 8 sublanes in tiled
# VMEM = 32*bn.  At bn = 262144 that is ~24 MiB total, comfortably inside the
# 40 MiB scoped-VMEM budget on v5e/v6e (128 MiB physical) and v7x (64 MiB).
_MAX_BLOCK_N = 262144


def _round_up(x, m):
    return (x + m - 1) // m * m


def _atloc_kernel(params_ref, fused_ref, out_ref, acc_ref):
    """One grid step over an (8, bn) lane-dense fused block.

    params_ref : SMEM f32[4]     -> [sax, saq, 1/(2N), 1/N]
    fused_ref  : VMEM f32[8, bn] -> rows 0-2 = pred (x, y, yaw_pred),
                                    rows 4-6 = target (pose_x, pose_y, yaw),
                                    rows 3, 7 = zero padding
    out_ref    : VMEM f32[1, 128] lane-dense scalar slab; loss at [0, 0]
    acc_ref    : VMEM f32[3, bn]  per-lane partial |diff| sums (rows x, y, yaw)
    """
    step = pl.program_id(0)

    @pl.when(step == 0)
    def _init():
        acc_ref[...] = jnp.zeros_like(acc_ref)

    # Hot loop: pure VPU work (sub, abs, add).  Row split / reductions deferred
    # to the finalize, which runs once.
    blk = fused_ref[...]                                    # (8, bn)
    acc_ref[...] += jnp.abs(blk[0:3, :] - blk[4:7, :])      # (3, bn)

    @pl.when(step == pl.num_programs(0) - 1)
    def _finalize():
        sax = params_ref[0]
        saq = params_ref[1]
        inv_2n = params_ref[2]
        inv_n = params_ref[3]
        acc = acc_ref[...]                                  # (3, bn)
        t_mean = jnp.sum(acc[0:2, :]) * inv_2n              # mean over x, y
        q_mean = jnp.sum(acc[2:3, :]) * inv_n               # mean over yaw
        loss = jnp.exp(-sax) * t_mean + sax + jnp.exp(-saq) * q_mean + saq
        out_ref[...] = jnp.broadcast_to(loss, out_ref.shape)


def atloc_criterion(pred, pose, yaw, sax, saq, *, block_n=_MAX_BLOCK_N):
    """Pallas implementation of AtLocCriterion.forward.

    pred: (N, 3) f32, pose: (N, 2) f32, yaw: (N,) f32, sax/saq: scalar f32.
    Returns a scalar f32 loss.
    """
    n = pred.shape[0]
    pred = pred.astype(jnp.float32)
    pose = pose.astype(jnp.float32)
    yaw = yaw.astype(jnp.float32)

    # Lane block size: multiple of 128 (BlockSpec divisibility), capped at the
    # lane-rounded N so typical batch sizes run in a single grid step.
    n_lane = _round_up(n, _LANE)
    bn = min(_round_up(max(int(block_n), _LANE), _LANE), n_lane)
    n_pad = _round_up(n, bn)
    num_blocks = n_pad // bn

    # One fused (8, N_pad) staging slab, built with a single stack + pad.
    # Padded lanes hold 0 in both pred and target rows -> |0 - 0| = 0.
    z = jnp.zeros((n,), jnp.float32)
    slab = jnp.stack(
        [pred[:, 0], pred[:, 1], pred[:, 2], z,
         pose[:, 0], pose[:, 1], yaw, z],
        axis=0)                                             # (8, N)
    if n_pad != n:
        slab = jnp.pad(slab, ((0, 0), (0, n_pad - n)))      # (8, N_pad)

    params = jnp.stack([
        jnp.asarray(sax, jnp.float32),
        jnp.asarray(saq, jnp.float32),
        jnp.asarray(1.0 / (2.0 * n), jnp.float32),
        jnp.asarray(1.0 / n, jnp.float32),
    ])

    cost = pl.CostEstimate(
        flops=9 * n_pad,                                    # sub+abs+add on 3 rows
        transcendentals=2,                                  # exp(-sax), exp(-saq)
        bytes_accessed=8 * n_pad * 4 + 4 * 4 + _LANE * 4,
    )

    # TODO(synk): optional v7x 2-TensorCore split (leading size-2 "parallel"
    # axis emitting per-core partial sums, combined in the wrapper) gated on
    # very large N (>~ a few hundred thousand rows); for batch-sized N the
    # second core is pure overhead.
    out = pl.pallas_call(
        _atloc_kernel,
        out_shape=jax.ShapeDtypeStruct((1, _LANE), jnp.float32),
        grid_spec=pltpu.PrefetchScalarGridSpec(
            num_scalar_prefetch=0,
            grid=(num_blocks,),
            in_specs=[
                pl.BlockSpec(memory_space=pltpu.SMEM),       # params (4,)
                pl.BlockSpec((8, bn), lambda i: (0, i)),     # fused slab
            ],
            out_specs=pl.BlockSpec((1, _LANE), lambda i: (0, 0)),
            scratch_shapes=[
                pltpu.VMEM((3, bn), jnp.float32),            # per-lane |diff| sums
            ],
        ),
        compiler_params=pltpu.CompilerParams(
            dimension_semantics=("arbitrary",),              # reduction over N
            vmem_limit_bytes=40 << 20,                       # < v7x 64 MiB ceiling
        ),
        cost_estimate=cost,
    )(params, slab)
    return out[0, 0]


def _reference(pred, pose, yaw, sax, saq):
    return (jnp.exp(-sax) * jnp.mean(jnp.abs(pred[:, :2] - pose)) + sax
            + jnp.exp(-saq) * jnp.mean(jnp.abs(pred[:, 2:] - yaw[:, None])) + saq)


if __name__ == "__main__":
    key = jax.random.PRNGKey(0)

    # --- Small-N case (single grid step), default parameter init (0, 0). ---
    k1, k2, k3 = jax.random.split(key, 3)
    N = 8
    pred = jax.random.normal(k1, (N, 3), dtype=jnp.float32)
    pose = jax.random.normal(k2, (N, 2), dtype=jnp.float32)
    yaw = jax.random.normal(k3, (N,), dtype=jnp.float32)
    sax = jnp.float32(0.0)
    saq = jnp.float32(0.0)

    loss = atloc_criterion(pred, pose, yaw, sax, saq)
    loss = jax.block_until_ready(loss)
    ref = _reference(pred, pose, yaw, sax, saq)
    assert jnp.allclose(loss, ref, rtol=1e-5, atol=1e-5), (loss, ref)

    # --- Larger-N case forcing multiple grid steps + lane padding. ---
    k4, k5, k6 = jax.random.split(jax.random.PRNGKey(0), 3)
    N2 = 300
    pred2 = jax.random.normal(k4, (N2, 3), dtype=jnp.float32)
    pose2 = jax.random.normal(k5, (N2, 2), dtype=jnp.float32)
    yaw2 = jax.random.normal(k6, (N2,), dtype=jnp.float32)
    sax2 = jnp.float32(-3.0)
    saq2 = jnp.float32(0.5)

    loss2 = atloc_criterion(pred2, pose2, yaw2, sax2, saq2, block_n=128)
    loss2 = jax.block_until_ready(loss2)
    ref2 = _reference(pred2, pose2, yaw2, sax2, saq2)
    assert jnp.allclose(loss2, ref2, rtol=1e-5, atol=1e-5), (loss2, ref2)

    # --- Non-multiple-of-128 block_n gets rounded up (200 -> 256, 2 steps). ---
    loss3 = atloc_criterion(pred2, pose2, yaw2, sax2, saq2, block_n=200)
    loss3 = jax.block_until_ready(loss3)
    assert jnp.allclose(loss3, ref2, rtol=1e-5, atol=1e-5), (loss3, ref2)

    print("KERNEL_OK")
</pallas_src>

<mosaic_0001>
module attributes {stable_mosaic.version = 11 : i64} {
  func.func @_atloc_kernel(%arg0: i32, %arg1: memref<4xf32, #tpu.memory_space<smem>>, %arg2: memref<8x128xf32, #tpu.memory_space<vmem>>, %arg3: memref<1x128xf32, #tpu.memory_space<vmem>>, %arg4: memref<3x128xf32, #tpu.memory_space<vmem>>) attributes {dimension_semantics = [#tpu.dimension_semantics<arbitrary>], iteration_bounds = array<i64: 1>, scalar_prefetch = 0 : i64, scratch_operands = 1 : i64, tpu.core_type = #tpu.core_type<tc>, window_params = [{transform_indices = @transform_0, window_bounds = array<i64: 4>}, {transform_indices = @transform_1, window_bounds = array<i64: 8, 128>}, {pipeline_mode = #tpu.pipeline_mode<synchronous>, transform_indices = @transform_2, window_bounds = array<i64: 1, 128>}]} {
    %c0_i32 = arith.constant 0 : i32
    %0 = arith.cmpi eq, %arg0, %c0_i32 : i32
    %1 = arith.extui %0 : i1 to i32
    %c0_i32_0 = arith.constant 0 : i32
    %2 = arith.cmpi ne, %1, %c0_i32_0 : i32
    scf.if %2 {
      %cst = arith.constant 0.000000e+00 : f32
      %14 = vector.broadcast %cst : f32 to vector<3x128xf32>
      %c0_8 = arith.constant 0 : index
      %c0_9 = arith.constant 0 : index
      %15 = vector.load %arg4[%c0_8, %c0_9] : memref<3x128xf32, #tpu.memory_space<vmem>>, vector<3x128xf32>
      tpu.vector_store %arg4[%c0_8, %c0_9], %14 {strides = array<i32>} : memref<3x128xf32, #tpu.memory_space<vmem>>, vector<3x128xf32>,
    } else {
    }
    %c0 = arith.constant 0 : index
    %c0_1 = arith.constant 0 : index
    %3 = vector.load %arg2[%c0, %c0_1] : memref<8x128xf32, #tpu.memory_space<vmem>>, vector<8x128xf32>
    %c0_2 = arith.constant 0 : index
    %c0_3 = arith.constant 0 : index
    %4 = vector.load %arg4[%c0_2, %c0_3] : memref<3x128xf32, #tpu.memory_space<vmem>>, vector<3x128xf32>
    %5 = vector.extract_strided_slice %3 {offsets = [0, 0], sizes = [3, 128], strides = [1, 1]} : vector<8x128xf32> to vector<3x128xf32>
    %6 = vector.extract_strided_slice %3 {offsets = [4, 0], sizes = [3, 128], strides = [1, 1]} : vector<8x128xf32> to vector<3x128xf32>
    %7 = arith.subf %5, %6 : vector<3x128xf32>
    %8 = math.absf %7 : vector<3x128xf32>
    %9 = arith.addf %4, %8 : vector<3x128xf32>
    %c0_4 = arith.constant 0 : index
    %c0_5 = arith.constant 0 : index
    %10 = vector.load %arg4[%c0_4, %c0_5] : memref<3x128xf32, #tpu.memory_space<vmem>>, vector<3x128xf32>
    tpu.vector_store %arg4[%c0_4, %c0_5], %9 {strides = array<i32>} : memref<3x128xf32, #tpu.memory_space<vmem>>, vector<3x128xf32>,
    %c0_i32_6 = arith.constant 0 : i32
    %11 = arith.cmpi eq, %arg0, %c0_i32_6 : i32
    %12 = arith.extui %11 : i1 to i32
    %c0_i32_7 = arith.constant 0 : i32
    %13 = arith.cmpi ne, %12, %c0_i32_7 : i32
    scf.if %13 {
      %c0_8 = arith.constant 0 : index
      %14 = memref.load %arg1[%c0_8] : memref<4xf32, #tpu.memory_space<smem>>
      %c1 = arith.constant 1 : index
      %15 = memref.load %arg1[%c1] : memref<4xf32, #tpu.memory_space<smem>>
      %c2 = arith.constant 2 : index
      %16 = memref.load %arg1[%c2] : memref<4xf32, #tpu.memory_space<smem>>
      %c3 = arith.constant 3 : index
      %17 = memref.load %arg1[%c3] : memref<4xf32, #tpu.memory_space<smem>>
      %c0_9 = arith.constant 0 : index
      %c0_10 = arith.constant 0 : index
      %18 = vector.load %arg4[%c0_9, %c0_10] : memref<3x128xf32, #tpu.memory_space<vmem>>, vector<3x128xf32>
      %19 = vector.extract_strided_slice %18 {offsets = [0, 0], sizes = [2, 128], strides = [1, 1]} : vector<3x128xf32> to vector<2x128xf32>
      %20 = vector.shape_cast %19 : vector<2x128xf32> to vector<1x2x128xf32>
      %cst = arith.constant dense<0.000000e+00> : vector<1xf32>
      %21 = vector.multi_reduction <add>, %20, %cst [1, 2] : vector<1x2x128xf32> to vector<1xf32>
      %22 = vector.shape_cast %21 : vector<1xf32> to vector<1x1x1xf32>
      %23 = vector.extract %22[0, 0, 0] : f32 from vector<1x1x1xf32>
      %24 = arith.mulf %23, %16 : f32
      %25 = vector.extract_strided_slice %18 {offsets = [2, 0], sizes = [1, 128], strides = [1, 1]} : vector<3x128xf32> to vector<1x128xf32>
      %26 = vector.shape_cast %25 : vector<1x128xf32> to vector<1x1x128xf32>
      %cst_11 = arith.constant dense<0.000000e+00> : vector<1xf32>
      %27 = vector.multi_reduction <add>, %26, %cst_11 [1, 2] : vector<1x1x128xf32> to vector<1xf32>
      %28 = vector.shape_cast %27 : vector<1xf32> to vector<1x1x1xf32>
      %29 = vector.extract %28[0, 0, 0] : f32 from vector<1x1x1xf32>
      %30 = arith.mulf %29, %17 : f32
      %cst_12 = arith.constant 0.000000e+00 : f32
      %31 = arith.subf %cst_12, %14 : f32
      %32 = math.exp %31 : f32
      %33 = arith.mulf %32, %24 : f32
      %34 = arith.addf %33, %14 : f32
      %cst_13 = arith.constant 0.000000e+00 : f32
      %35 = arith.subf %cst_13, %15 : f32
      %36 = math.exp %35 : f32
      %37 = arith.mulf %36, %30 : f32
      %38 = arith.addf %34, %37 : f32
      %39 = arith.addf %38, %15 : f32
      %40 = vector.broadcast %39 : f32 to vector<1x128xf32>
      %c0_14 = arith.constant 0 : index
      %c0_15 = arith.constant 0 : index
      %41 = vector.load %arg3[%c0_14, %c0_15] : memref<1x128xf32, #tpu.memory_space<vmem>>, vector<1x128xf32>
      tpu.vector_store %arg3[%c0_14, %c0_15], %40 {strides = array<i32>} : memref<1x128xf32, #tpu.memory_space<vmem>>, vector<1x128xf32>,
    } else {
    }
    return
  }
  func.func @transform_0(%arg0: i32) -> i32 {
    %c0_i32 = arith.constant 0 : i32
    %c0_i32_0 = arith.constant 0 : i32
    return %c0_i32 : i32
  }
  func.func @transform_1(%arg0: i32) -> (i32, i32) {
    %c0_i32 = arith.constant 0 : i32
    %c0_i32_0 = arith.constant 0 : i32
    return %c0_i32, %arg0 : i32, i32
  }
  func.func @transform_2(%arg0: i32) -> (i32, i32) {
    %c0_i32 = arith.constant 0 : i32
    %c0_i32_0 = arith.constant 0 : i32
    %c0_i32_1 = arith.constant 0 : i32
    return %c0_i32, %c0_i32_0 : i32, i32
  }
}

</mosaic_0001>

<llo_original>
// kernel: tpu_custom_call.1
$region0: #{tpu_custom_call.1}
  #allocation0 [shape = 'u32[]', space=smem, size = 0x4, offset = 0x4, fixed_abs, tag = 'smem constant byte address 0x4 - core index']
  #allocation1 [shape = 'u32[144,128]{1,0:T(1,128)}', space=vmem, size = 0x12000, scoped, tag = 'internal scratch']
  #allocation2 [shape = 'f32[3,128]{1,0:T(4,128)}', space=vmem, size = 0x800, scoped, tag = 'scratch operand']
  %s0 = inlined_call_operand.hbm [shape: f32[4], index: 0, kind: input, shape index: {}]
  %s1 = inlined_call_operand.hbm [shape: f32[8,128], index: 1, kind: input, shape index: {}]
  %s2 = inlined_call_operand.hbm [shape: f32[1,128], index: 2, kind: output, shape index: {}]
  %s3 = sld [smem:[#allocation0]]
  $region34: #{tpu_custom_call.1} parent=0
    _
  %s5 = ssub.s32 1, %s3
  %s6 = scalar_select 0, %s5, %s3
  $region1: #{tpu_custom_call.1} parent=0
    #allocation3 [shape = 'u8[512]{0}', space=smem, size = 0x200, scoped, tag = 'input window, operand 0, single buffered']
    #allocation4 [shape = 's32[1]{0}', space=sflag, size = 0x4, scoped, tag = 'scoped memory for tpu_custom_call.1']
    #allocation5 [shape = 's32[1]{0}', space=sflag, size = 0x4, scoped, tag = 'scoped memory for tpu_custom_call.1']
    #allocation6 [shape = 's32[1]{0}', space=sflag, size = 0x4, scoped, tag = 'scoped memory for tpu_custom_call.1']
    #allocation7 [shape = 'u8[4096]{0}', space=vmem, size = 0x1000, scoped, tag = 'input window, operand 1, single buffered']
    #allocation8 [shape = 'u8[512]{0}', space=vmem, size = 0x400, scoped, tag = 'output window, operand 0, single buffered']
    %7 = vsyncpa [#allocation6], 0
    %8 = vsyncpa [#allocation4], 0
    %9 = vsyncpa [#allocation5], 0
    // Predicated region
    $region2: #{tpu_custom_call.1} parent=1 // pred_check
      _
    $region3: #{tpu_custom_call.1} parent=1 // pred_check_branch
      %11 = sbr.rel (0) target = $region5
    $region4: #{tpu_custom_call.1} parent=1 // pred_region
      %s13 = ssub.s32 16, 16
      %14 = vsyncadd [#allocation6], %s13
      %17 = dma.hbm_to_smem %s0, 16, [#allocation3], [#allocation6]
    $region5: #{tpu_custom_call.1} parent=1 // pred_fallthru
      _
    // Predicated region
    $region6: #{tpu_custom_call.1} parent=1 // pred_check
      _
    $region7: #{tpu_custom_call.1} parent=1 // pred_check_branch
      %19 = sbr.rel (0) target = $region9
    $region8: #{tpu_custom_call.1} parent=1 // pred_region
      %s21 = ssub.s32 128, 128
      %22 = vsyncadd [#allocation4], %s21
      %s24 = sshll.u32 [#allocation7], 4
      %s25 = int_to_ptr.vmem [resolvable:$true] %s24
      %27 = dma.hbm_to_vmem [thread:$0]  %s1, 128, %s25, [#allocation4]
    $region9: #{tpu_custom_call.1} parent=1 // pred_fallthru
      _
    // Predicated region
    $region10: #{tpu_custom_call.1} parent=1 // pred_check
      _
    $region11: #{tpu_custom_call.1} parent=1 // pred_check_branch
      %29 = sbr.rel (0) target = $region13
    $region12: #{tpu_custom_call.1} parent=1 // pred_region
      %30 = dma.done [#allocation6], 16
    $region13: #{tpu_custom_call.1} parent=1 // pred_fallthru
      _
    // Predicated region
    $region14: #{tpu_custom_call.1} parent=1 // pred_check
      _
    $region15: #{tpu_custom_call.1} parent=1 // pred_check_branch
      %32 = sbr.rel (0) target = $region17
    $region16: #{tpu_custom_call.1} parent=1 // pred_region
      %33 = dma.done [#allocation4], 128
    $region17: #{tpu_custom_call.1} parent=1 // pred_fallthru
      _
    %34 = sfence
    %p35 = scmp.eq.s32.totalorder 0, 0
    // Predicated region
    $region18: #{tpu_custom_call.1} parent=1 // pred_check
      %p36 = pneg %p35
    $region19: #{tpu_custom_call.1} parent=1 // pred_check_branch
      %38 = sbr.rel (%p36) target = $region21
    $region20: #{tpu_custom_call.1} parent=1 // pred_region
      %39 = vst [vmem:[#allocation2] sm:$0x7] 0.0
    $region21: #{tpu_custom_call.1} parent=1 // pred_fallthru
      _
    %v40 = vld [vmem:[#allocation7] sm:$0xff]
    %v41 = vld [vmem:[#allocation2] sm:$0x7]
    %v43 = vrot.slane %v40, 4
    %v45 = vsub.f32 %v40, %v43
    %v46 = vand.u32 2147483647, %v45
    %v47 = vadd.f32 %v41, %v46
    %48 = vst [vmem:[#allocation2] sm:$0x7] %v47
    // Predicated region
    $region22: #{tpu_custom_call.1} parent=1 // pred_check
      %p49 = pneg %p35
    $region23: #{tpu_custom_call.1} parent=1 // pred_check_branch
      %51 = sbr.rel (%p49) target = $region25
    $region24: #{tpu_custom_call.1} parent=1 // pred_region
      %s52 = sld [smem:[#allocation3]]
      %s53 = sld [smem:[#allocation3 + $0x1]]
      %s54 = sld [smem:[#allocation3 + $0x2]]
      %s55 = sld [smem:[#allocation3 + $0x3]]
      %v56 = vld [vmem:[#allocation2] sm:$0x7]
      %vm57 = vcmask 1041408
      %v58 = vsel %vm57, %v56, 0.0
      %59 = vadd.xlane.f32.xlu0 %v58
      %v60 = vpop.xlane.xlu0 %59
      %v61 = vrot.slane %v60, 4
      %v62 = vadd.f32 %v60, %v61
      %v63 = vrot.slane %v62, 2
      %v64 = vadd.f32 %v62, %v63
      %v65 = vrot.slane %v64, 1
      %v66 = vadd.f32 %v64, %v65
      %s67 = vtos %v66
      %s68 = smul.f32 %s67, %s54
      %v70 = vrot.slane %v56, 2
      %vm72 = vcmask 1040384
      %v73 = vsel %vm72, %v70, 0.0
      %74 = vadd.xlane.f32.xlu0 %v73
      %v75 = vpop.xlane.xlu0 %74
      %v76 = vrot.slane %v75, 4
      %v77 = vadd.f32 %v75, %v76
      %v78 = vrot.slane %v77, 2
      %v79 = vadd.f32 %v77, %v78
      %v80 = vrot.slane %v79, 1
      %v81 = vadd.f32 %v79, %v80
      %s82 = vtos %v81
      %s83 = smul.f32 %s82, %s55
      %s84 = ssub.f32 0.0, %s52
      %v85 = vstv %s84
      %v86 = vmul.f32 %v85, 1.442695
      %v87 = vpow.pop %v86
      %s88 = vtos %v87
      %s89 = smul.f32 %s88, %s68
      %s90 = sadd.f32 %s89, %s52
      %s91 = ssub.f32 0.0, %s53
      %v92 = vstv %s91
      %v93 = vmul.f32 %v92, 1.442695
      %v94 = vpow.pop %v93
      %s95 = vtos %v94
      %s96 = smul.f32 %s95, %s83
      %s97 = sadd.f32 %s90, %s96
      %s98 = sadd.f32 %s97, %s53
      %v99 = vstv %s98
      %100 = vst [vmem:[#allocation8] sm:$0x1] %v99
    $region25: #{tpu_custom_call.1} parent=1 // pred_fallthru
      _
    // Predicated region
    $region26: #{tpu_custom_call.1} parent=1 // pred_check
      _
    $region27: #{tpu_custom_call.1} parent=1 // pred_check_branch
      %102 = sbr.rel (0) target = $region29
    $region28: #{tpu_custom_call.1} parent=1 // pred_region
      %s104 = ssub.s32 16, 16
      %105 = vsyncadd [#allocation5], %s104
      %s107 = sshll.u32 [#allocation8], 4
      %s108 = int_to_ptr.vmem [resolvable:$true] %s107
      %110 = dma.vmem_to_hbm [thread:$0]  %s108, 16, %s2, [#allocation5]
    $region29: #{tpu_custom_call.1} parent=1 // pred_fallthru
      _
    // Predicated region
    $region30: #{tpu_custom_call.1} parent=1 // pred_check
      _
    $region31: #{tpu_custom_call.1} parent=1 // pred_check_branch
      %112 = sbr.rel (0) target = $region33
    $region32: #{tpu_custom_call.1} parent=1 // pred_region
      %113 = dma.done [#allocation5], 16
    $region33: #{tpu_custom_call.1} parent=1 // pred_fallthru
      _
    %114 = vsyncpa [#allocation4], 1
    %115 = vsyncpa [#allocation5], 1
    %116 = vsyncpa [#allocation6], 1

</llo_original>
